<compile_context>
chip_gen: v5e
topology: v5e:2x2
jax: 0.10.0
libtpu: 0.0.40
codegen_flags: <defaults>
</compile_context>

<pallas_src>
import jax
import jax.numpy as jnp
from jax.experimental import pallas as pl
from jax.experimental.pallas import tpu as pltpu

_LANE = 128


def _round_up(x, m):
    return (x + m - 1) // m * m


def ensemble_mlp_kernel(x_ref, w1_ref, b1_ref, w2_ref, b2_ref, w3_ref, b3_ref,
                        out_ref):
    """One batch tile; ensemble packed on the lane axis.

    x_ref : [TM, D]
    w1_ref: [D, Lp1]      b1_ref: [1, Lp1]     (Lp1 = pad(E*H1, 128))
    w2_ref: [Lp1, Lp2]    b2_ref: [1, Lp2]     (block-diagonal W2, Lp2 = pad(E*H2, 128))
    w3_ref: [1, Lp2]      (1/E folded in)      b3_ref: [1] scalar in SMEM (mean of b3)
    out_ref: [TM, 1]
    """
    w1 = w1_ref[...]
    x = x_ref[...].astype(w1.dtype)          # no-op when weights are f32
    # Layer 1: all ensemble members in one MXU matmul (lanes = E*H1, zero-padded).
    h1 = jnp.dot(x, w1, preferred_element_type=jnp.float32) + b1_ref[...]
    h1 = jnp.maximum(h1, 0.0)
    # Layer 2: block-diagonal weights keep members independent.
    w2 = w2_ref[...]
    h2 = jnp.dot(h1.astype(w2.dtype), w2,
                 preferred_element_type=jnp.float32) + b2_ref[...]
    h2 = jnp.maximum(h2, 0.0)
    # Layer 3 fused with the ensemble mean (1/E pre-folded into the w3 row):
    #   mean_e(h2_e . w3_e + b3_e) = sum_lanes(h2_packed * w3_row) + mean(b3)
    # Lane reduction runs on the XLU instead of an N=1 MXU matmul.
    r = jnp.sum(h2 * w3_ref[...], axis=-1, keepdims=True)     # [TM, 1]
    out_ref[...] = r + b3_ref[0]                               # SMEM scalar broadcast


def pack_params(params, weight_dtype=jnp.float32):
    """One-time packing of per-member weights into lane-folded, 128-padded form.

    Input (PyTorch-equivalent, already [in, out] layout):
      w1 [E, D, H1], b1 [E, H1], w2 [E, H1, H2], b2 [E, H2], w3 [E, H2, 1], b3 [E, 1]
    `weight_dtype=jnp.bfloat16` gives narrow MXU operands for large-batch v6e/v7x runs
    (keep f32 on v5e: its VPU/EUP have no bf16).
    """
    w1, b1, w2, b2, w3, b3 = params
    E, D, H1 = w1.shape
    H2 = w2.shape[2]
    L1, L2 = E * H1, E * H2
    Lp1, Lp2 = _round_up(L1, _LANE), _round_up(L2, _LANE)

    # W1: concat members along the output/lane axis -> [D, Lp1] (e-major columns).
    w1p = jnp.zeros((D, Lp1), jnp.float32).at[:, :L1].set(
        jnp.transpose(w1, (1, 0, 2)).reshape(D, L1))
    b1p = jnp.zeros((1, Lp1), jnp.float32).at[:, :L1].set(b1.reshape(1, L1))

    # W2: block-diagonal [Lp1, Lp2] so members stay independent through layer 2.
    # (Wasteful for large E — switch to a grid axis over E if E/H grow; see header.)
    w2p = jnp.zeros((Lp1, Lp2), jnp.float32)
    for e in range(E):
        w2p = w2p.at[e * H1:(e + 1) * H1, e * H2:(e + 1) * H2].set(w2[e])
    b2p = jnp.zeros((1, Lp2), jnp.float32).at[:, :L2].set(b2.reshape(1, L2))

    # W3 row with the ensemble mean folded in (scale by 1/E); padded lanes stay zero.
    w3p = jnp.zeros((1, Lp2), jnp.float32).at[:, :L2].set(
        w3[..., 0].reshape(1, L2) / E)
    # b3: only its ensemble mean survives; shipped as a (1,) SMEM scalar.
    b3m = jnp.mean(b3).reshape(1).astype(jnp.float32)

    return (w1p.astype(weight_dtype), b1p, w2p.astype(weight_dtype), b2p, w3p, b3m)


def reward_model_ensemble_pallas(x, packed_params, *, tm=None):
    """x: [B, D] f32; packed_params from pack_params(). Returns [B, 1] f32."""
    w1p, b1p, w2p, b2p, w3p, b3m = packed_params
    B, D = x.shape
    Lp1 = w1p.shape[1]
    Lp2 = w2p.shape[1]
    if tm is None:
        # 256-row tiles fill the 2x256x256 MXU on v6e/v7x (pass tm=128 on v5e);
        # tiny batches collapse to a single tile.
        tm = 256 if B >= 256 else _round_up(max(B, 1), 8)
    b_pad = _round_up(B, tm)
    x_p = jnp.pad(x, ((0, b_pad - B), (0, 0))) if b_pad != B else x

    out = pl.pallas_call(
        ensemble_mlp_kernel,
        out_shape=jax.ShapeDtypeStruct((b_pad, 1), jnp.float32),
        grid_spec=pltpu.PrefetchScalarGridSpec(
            num_scalar_prefetch=0,
            grid=(b_pad // tm,),
            in_specs=[
                pl.BlockSpec((tm, D), lambda i: (i, 0)),       # activations: tiled
                pl.BlockSpec((D, Lp1), lambda i: (0, 0)),      # weights: VMEM-resident
                pl.BlockSpec((1, Lp1), lambda i: (0, 0)),
                pl.BlockSpec((Lp1, Lp2), lambda i: (0, 0)),
                pl.BlockSpec((1, Lp2), lambda i: (0, 0)),
                pl.BlockSpec((1, Lp2), lambda i: (0, 0)),
                pl.BlockSpec(memory_space=pltpu.MemorySpace.SMEM),  # mean(b3) scalar
            ],
            out_specs=pl.BlockSpec((tm, 1), lambda i: (i, 0)),
        ),
        compiler_params=pltpu.CompilerParams(
            dimension_semantics=("parallel",)),   # batch axis -> both v7x TensorCores
    )(x_p, w1p, b1p, w2p, b2p, w3p, b3m)
    return out[:B]


@jax.jit
def reward_model_ensemble_jnp(x, packed_params):
    """Fused-XLA fallback for tiny batches (Pallas launch overhead dominates there)."""
    w1p, b1p, w2p, b2p, w3p, b3m = packed_params
    h1 = jnp.maximum(
        jnp.dot(x.astype(w1p.dtype), w1p, preferred_element_type=jnp.float32) + b1p, 0.0)
    h2 = jnp.maximum(
        jnp.dot(h1.astype(w2p.dtype), w2p, preferred_element_type=jnp.float32) + b2p, 0.0)
    return jnp.sum(h2 * w3p, axis=-1, keepdims=True) + b3m[0]


def reward_model_ensemble_forward(x, packed_params, *, min_pallas_batch=256,
                                  force_pallas=False, tm=None):
    """Dispatcher: Pallas kernel at scale, plain jnp (XLA-fused) for tiny batches."""
    if force_pallas or x.shape[0] >= min_pallas_batch:
        return reward_model_ensemble_pallas(x, packed_params, tm=tm)
    return reward_model_ensemble_jnp(x, packed_params)


def init_params(key, ensemble_size, in_dim, h1, h2):
    """Deterministic synthetic parameters (shapes match RewardModel with h3_rm=None)."""
    keys = jax.random.split(key, 6)
    w1 = jax.random.normal(keys[0], (ensemble_size, in_dim, h1), jnp.float32) * 0.1
    b1 = jax.random.normal(keys[1], (ensemble_size, h1), jnp.float32) * 0.1
    w2 = jax.random.normal(keys[2], (ensemble_size, h1, h2), jnp.float32) * 0.1
    b2 = jax.random.normal(keys[3], (ensemble_size, h2), jnp.float32) * 0.1
    w3 = jax.random.normal(keys[4], (ensemble_size, h2, 1), jnp.float32) * 0.1
    b3 = jax.random.normal(keys[5], (ensemble_size, 1), jnp.float32) * 0.1
    return (w1, b1, w2, b2, w3, b3)


def reference_forward(x, params):
    """Pure-JAX reference matching the PyTorch module (per-member loop)."""
    w1, b1, w2, b2, w3, b3 = params
    E = w1.shape[0]
    out = 0.0
    for e in range(E):
        h1 = jnp.maximum(x @ w1[e] + b1[e], 0.0)
        h2 = jnp.maximum(h1 @ w2[e] + b2[e], 0.0)
        out = out + (h2 @ w3[e] + b3[e])
    return out / E


if __name__ == "__main__":
    # Module-consistent small shapes: state_size=12, action_size=4 -> D=16,
    # h1_rm=32, h2_rm=32, h3_rm=None, size_rm_ensemble=2, batch=8.
    B, STATE, ACTION, H1, H2, E = 8, 12, 4, 32, 32, 2
    D = STATE + ACTION

    key = jax.random.PRNGKey(0)
    k_x, k_p = jax.random.split(key)
    x = jax.random.normal(k_x, (B, D), jnp.float32)
    params = init_params(k_p, E, D, H1, H2)
    ref = reference_forward(x, params)

    # Pack once at init time (not per forward call); f32 weights.
    packed_f32 = jax.tree_util.tree_map(jax.block_until_ready, pack_params(params))

    # Pallas kernel path (forced: demo batch is below the tiny-batch gate).
    out = reward_model_ensemble_forward(x, packed_f32, force_pallas=True)
    out = jax.block_until_ready(out)
    assert out.shape == (B, 1), out.shape
    assert jnp.allclose(out, ref, atol=1e-5, rtol=1e-4), (out, ref)

    # bf16 MXU-operand variant (large-batch v6e/v7x recipe); looser tolerance.
    packed_bf16 = pack_params(params, weight_dtype=jnp.bfloat16)
    out_bf16 = jax.block_until_ready(
        reward_model_ensemble_forward(x, packed_bf16, force_pallas=True))
    assert jnp.allclose(out_bf16, ref, atol=1e-1, rtol=1e-1), (out_bf16, ref)

    # Tiny-batch gate: dispatcher falls back to the fused XLA path below the threshold.
    out_gate = jax.block_until_ready(reward_model_ensemble_forward(x, packed_f32))
    assert jnp.allclose(out_gate, ref, atol=1e-5, rtol=1e-4), (out_gate, ref)

    print("KERNEL_OK")
</pallas_src>

<mosaic_0001>
module attributes {stable_mosaic.version = 11 : i64} {
  func.func @ensemble_mlp_kernel(%arg0: i32, %arg1: memref<8x16xf32, #tpu.memory_space<vmem>>, %arg2: memref<16x128xf32, #tpu.memory_space<vmem>>, %arg3: memref<1x128xf32, #tpu.memory_space<vmem>>, %arg4: memref<128x128xf32, #tpu.memory_space<vmem>>, %arg5: memref<1x128xf32, #tpu.memory_space<vmem>>, %arg6: memref<1x128xf32, #tpu.memory_space<vmem>>, %arg7: memref<1xf32, #tpu.memory_space<smem>>, %arg8: memref<8x1xf32, #tpu.memory_space<vmem>>) attributes {dimension_semantics = [#tpu.dimension_semantics<parallel>], iteration_bounds = array<i64: 1>, scalar_prefetch = 0 : i64, scratch_operands = 0 : i64, tpu.core_type = #tpu.core_type<tc>, window_params = [{transform_indices = @transform_0, window_bounds = array<i64: 8, 16>}, {pipeline_mode = #tpu.pipeline_mode<synchronous>, transform_indices = @transform_1, window_bounds = array<i64: 16, 128>}, {pipeline_mode = #tpu.pipeline_mode<synchronous>, transform_indices = @transform_2, window_bounds = array<i64: 1, 128>}, {pipeline_mode = #tpu.pipeline_mode<synchronous>, transform_indices = @transform_3, window_bounds = array<i64: 128, 128>}, {pipeline_mode = #tpu.pipeline_mode<synchronous>, transform_indices = @transform_4, window_bounds = array<i64: 1, 128>}, {pipeline_mode = #tpu.pipeline_mode<synchronous>, transform_indices = @transform_5, window_bounds = array<i64: 1, 128>}, {transform_indices = @transform_6, window_bounds = array<i64: 1>}, {transform_indices = @transform_7, window_bounds = array<i64: 8, 1>}]} {
    %c0 = arith.constant 0 : index
    %c0_0 = arith.constant 0 : index
    %0 = vector.load %arg2[%c0, %c0_0] : memref<16x128xf32, #tpu.memory_space<vmem>>, vector<16x128xf32>
    %c0_1 = arith.constant 0 : index
    %c0_2 = arith.constant 0 : index
    %1 = vector.load %arg1[%c0_1, %c0_2] : memref<8x16xf32, #tpu.memory_space<vmem>>, vector<8x16xf32>
    %cst = arith.constant dense<0.000000e+00> : vector<8x128xf32>
    %2 = tpu.matmul %1, %0, %cst {dimension_numbers = #tpu.dot_dimension_numbers<[1], [0], [0], [1], [0, 0, 1, 1], [], []>} : vector<8x16xf32>, vector<16x128xf32>, vector<8x128xf32> -> vector<8x128xf32>
    %c0_3 = arith.constant 0 : index
    %c0_4 = arith.constant 0 : index
    %3 = vector.load %arg3[%c0_3, %c0_4] : memref<1x128xf32, #tpu.memory_space<vmem>>, vector<1x128xf32>
    %4 = vector.broadcast %3 : vector<1x128xf32> to vector<8x128xf32>
    %5 = arith.addf %2, %4 : vector<8x128xf32>
    %cst_5 = arith.constant 0.000000e+00 : f32
    %6 = vector.broadcast %cst_5 : f32 to vector<8x128xf32>
    %7 = arith.maximumf %5, %6 : vector<8x128xf32>
    %c0_6 = arith.constant 0 : index
    %c0_7 = arith.constant 0 : index
    %8 = vector.load %arg4[%c0_6, %c0_7] : memref<128x128xf32, #tpu.memory_space<vmem>>, vector<128x128xf32>
    %cst_8 = arith.constant dense<0.000000e+00> : vector<8x128xf32>
    %9 = tpu.matmul %7, %8, %cst_8 {dimension_numbers = #tpu.dot_dimension_numbers<[1], [0], [0], [1], [0, 0, 1, 1], [], []>} : vector<8x128xf32>, vector<128x128xf32>, vector<8x128xf32> -> vector<8x128xf32>
    %c0_9 = arith.constant 0 : index
    %c0_10 = arith.constant 0 : index
    %10 = vector.load %arg5[%c0_9, %c0_10] : memref<1x128xf32, #tpu.memory_space<vmem>>, vector<1x128xf32>
    %11 = vector.broadcast %10 : vector<1x128xf32> to vector<8x128xf32>
    %12 = arith.addf %9, %11 : vector<8x128xf32>
    %cst_11 = arith.constant 0.000000e+00 : f32
    %13 = vector.broadcast %cst_11 : f32 to vector<8x128xf32>
    %14 = arith.maximumf %12, %13 : vector<8x128xf32>
    %c0_12 = arith.constant 0 : index
    %c0_13 = arith.constant 0 : index
    %15 = vector.load %arg6[%c0_12, %c0_13] : memref<1x128xf32, #tpu.memory_space<vmem>>, vector<1x128xf32>
    %16 = vector.broadcast %15 : vector<1x128xf32> to vector<8x128xf32>
    %17 = arith.mulf %14, %16 : vector<8x128xf32>
    %cst_14 = arith.constant dense<0.000000e+00> : vector<8xf32>
    %18 = vector.multi_reduction <add>, %17, %cst_14 [1] : vector<8x128xf32> to vector<8xf32>
    %19 = vector.shape_cast %18 : vector<8xf32> to vector<8x1xf32>
    %c0_15 = arith.constant 0 : index
    %20 = memref.load %arg7[%c0_15] : memref<1xf32, #tpu.memory_space<smem>>
    %21 = vector.broadcast %20 : f32 to vector<8x1xf32>
    %22 = arith.addf %19, %21 : vector<8x1xf32>
    %c0_16 = arith.constant 0 : index
    %c0_17 = arith.constant 0 : index
    %23 = vector.load %arg8[%c0_16, %c0_17] : memref<8x1xf32, #tpu.memory_space<vmem>>, vector<8x1xf32>
    tpu.vector_store %arg8[%c0_16, %c0_17], %22 {strides = array<i32>} : memref<8x1xf32, #tpu.memory_space<vmem>>, vector<8x1xf32>,
    return
  }
  func.func @transform_0(%arg0: i32) -> (i32, i32) {
    %c0_i32 = arith.constant 0 : i32
    %c0_i32_0 = arith.constant 0 : i32
    return %arg0, %c0_i32 : i32, i32
  }
  func.func @transform_1(%arg0: i32) -> (i32, i32) {
    %c0_i32 = arith.constant 0 : i32
    %c0_i32_0 = arith.constant 0 : i32
    %c0_i32_1 = arith.constant 0 : i32
    return %c0_i32, %c0_i32_0 : i32, i32
  }
  func.func @transform_2(%arg0: i32) -> (i32, i32) {
    %c0_i32 = arith.constant 0 : i32
    %c0_i32_0 = arith.constant 0 : i32
    %c0_i32_1 = arith.constant 0 : i32
    return %c0_i32, %c0_i32_0 : i32, i32
  }
  func.func @transform_3(%arg0: i32) -> (i32, i32) {
    %c0_i32 = arith.constant 0 : i32
    %c0_i32_0 = arith.constant 0 : i32
    %c0_i32_1 = arith.constant 0 : i32
    return %c0_i32, %c0_i32_0 : i32, i32
  }
  func.func @transform_4(%arg0: i32) -> (i32, i32) {
    %c0_i32 = arith.constant 0 : i32
    %c0_i32_0 = arith.constant 0 : i32
    %c0_i32_1 = arith.constant 0 : i32
    return %c0_i32, %c0_i32_0 : i32, i32
  }
  func.func @transform_5(%arg0: i32) -> (i32, i32) {
    %c0_i32 = arith.constant 0 : i32
    %c0_i32_0 = arith.constant 0 : i32
    %c0_i32_1 = arith.constant 0 : i32
    return %c0_i32, %c0_i32_0 : i32, i32
  }
  func.func @transform_6(%arg0: i32) -> i32 {
    %c0_i32 = arith.constant 0 : i32
    %c0_i32_0 = arith.constant 0 : i32
    return %c0_i32 : i32
  }
  func.func @transform_7(%arg0: i32) -> (i32, i32) {
    %c0_i32 = arith.constant 0 : i32
    %c0_i32_0 = arith.constant 0 : i32
    return %arg0, %c0_i32 : i32, i32
  }
}

</mosaic_0001>

<llo_original>
// kernel: tpu_custom_call.1
$region0: #{tpu_custom_call.1}
  #allocation0 [shape = 'u32[]', space=smem, size = 0x4, offset = 0x4, fixed_abs, tag = 'smem constant byte address 0x4 - core index']
  #allocation1 [shape = 'u32[72,128]{1,0:T(1,128)}', space=vmem, size = 0x9000, scoped, tag = 'internal scratch']
  #allocation2 [shape = 'f32[1]{0:T(128)S(6)}', space=smem, size = 0x200, scoped, tag = 'scoped memory for tpu_custom_call.1']
  %s0 = inlined_call_operand.hbm [shape: f32[8,16], index: 0, kind: input, shape index: {}]
  %s1 = inlined_call_operand.hbm [shape: f32[16,128], index: 1, kind: input, shape index: {}]
  %s2 = inlined_call_operand.vmem [shape: f32[1,128], index: 2, kind: input, shape index: {}]
  %s3 = inlined_call_operand.hbm [shape: f32[128,128], index: 3, kind: input, shape index: {}]
  %s4 = inlined_call_operand.vmem [shape: f32[1,128], index: 4, kind: input, shape index: {}]
  %s5 = inlined_call_operand.vmem [shape: f32[1,128], index: 5, kind: input, shape index: {}]
  %s6 = inlined_call_operand.<no memory space> [shape: f32[1], index: 6, kind: input, shape index: {}]
  %s7 = inlined_call_operand.vmem [shape: f32[8,1], index: 7, kind: output, shape index: {}]
  %s8 = sld [smem:[#allocation0]]
  $region50: #{tpu_custom_call.1} parent=0
    _
  %s10 = ssub.s32 1, %s8
  %s11 = scalar_select 0, %s10, %s8
  %12 = sst [smem:[#allocation2]] %s6
  $region1: #{tpu_custom_call.1} parent=0
    #allocation3 [shape = 'u8[4096]{0}', space=vmem, size = 0x1000, scoped, tag = 'input window, operand 0, single buffered']
    #allocation4 [shape = 's32[1]{0}', space=sflag, size = 0x4, scoped, tag = 'scoped memory for tpu_custom_call.1']
    #allocation5 [shape = 'u8[8192]{0}', space=vmem, size = 0x2000, scoped, tag = 'input window, operand 1, single buffered']
    #allocation6 [shape = 's32[1]{0}', space=sflag, size = 0x4, scoped, tag = 'scoped memory for tpu_custom_call.1']
    #allocation7 [shape = 'u8[65536]{0}', space=vmem, size = 0x10000, scoped, tag = 'input window, operand 3, single buffered']
    %13 = vsyncpa [#allocation4], 0
    %14 = vsyncpa [#allocation6], 0
    // Predicated region
    $region2: #{tpu_custom_call.1} parent=1 // pred_check
      _
    $region3: #{tpu_custom_call.1} parent=1 // pred_check_branch
      %16 = sbr.rel (0) target = $region5
    $region4: #{tpu_custom_call.1} parent=1 // pred_region
      %18 = vsyncadd [#allocation4], 0
      %s20 = sshll.u32 %s0, 4
      %s21 = int_to_ptr.hbm [resolvable:$true] %s20
      %s22 = sshll.u32 [#allocation3], 4
      %s23 = int_to_ptr.vmem [resolvable:$true] %s22
      %25 = dma.hbm_to_vmem [thread:$0]  %s21, 128, %s23, [#allocation4]
    $region5: #{tpu_custom_call.1} parent=1 // pred_fallthru
      _
    // Predicated region
    $region6: #{tpu_custom_call.1} parent=1 // pred_check
      _
    $region7: #{tpu_custom_call.1} parent=1 // pred_check_branch
      %27 = sbr.rel (0) target = $region9
    $region8: #{tpu_custom_call.1} parent=1 // pred_region
      %29 = vsyncadd [#allocation6], 0
      %s30 = sshll.u32 %s1, 4
      %s31 = int_to_ptr.hbm [resolvable:$true] %s30
      %s32 = sshll.u32 [#allocation5], 4
      %s33 = int_to_ptr.vmem [resolvable:$true] %s32
      %38 = dma.hbm_to_vmem [thread:$0]  %s31, 256, %s33, [#allocation6], 128, 128, 8
    $region9: #{tpu_custom_call.1} parent=1 // pred_fallthru
      _
    // Predicated region
    $region10: #{tpu_custom_call.1} parent=1 // pred_check
      _
    $region11: #{tpu_custom_call.1} parent=1 // pred_check_branch
      %40 = sbr.rel (0) target = $region13
    $region12: #{tpu_custom_call.1} parent=1 // pred_region
      _
    $region13: #{tpu_custom_call.1} parent=1 // pred_fallthru
      _
    // Predicated region
    $region14: #{tpu_custom_call.1} parent=1 // pred_check
      _
    $region15: #{tpu_custom_call.1} parent=1 // pred_check_branch
      %42 = sbr.rel (0) target = $region17
    $region16: #{tpu_custom_call.1} parent=1 // pred_region
      %44 = vsyncadd [#allocation6], 0
      %s45 = sshll.u32 %s3, 4
      %s46 = int_to_ptr.hbm [resolvable:$true] %s45
      %s47 = sshll.u32 [#allocation7], 4
      %s48 = int_to_ptr.vmem [resolvable:$true] %s47
      %53 = dma.hbm_to_vmem [thread:$0]  %s46, 2048, %s48, [#allocation6], 128, 128, 8
    $region17: #{tpu_custom_call.1} parent=1 // pred_fallthru
      _
    // Predicated region
    $region18: #{tpu_custom_call.1} parent=1 // pred_check
      _
    $region19: #{tpu_custom_call.1} parent=1 // pred_check_branch
      %55 = sbr.rel (0) target = $region21
    $region20: #{tpu_custom_call.1} parent=1 // pred_region
      _
    $region21: #{tpu_custom_call.1} parent=1 // pred_fallthru
      _
    // Predicated region
    $region22: #{tpu_custom_call.1} parent=1 // pred_check
      _
    $region23: #{tpu_custom_call.1} parent=1 // pred_check_branch
      %57 = sbr.rel (0) target = $region25
    $region24: #{tpu_custom_call.1} parent=1 // pred_region
      _
    $region25: #{tpu_custom_call.1} parent=1 // pred_fallthru
      _
    // Predicated region
    $region26: #{tpu_custom_call.1} parent=1 // pred_check
      _
    $region27: #{tpu_custom_call.1} parent=1 // pred_check_branch
      %59 = sbr.rel (0) target = $region29
    $region28: #{tpu_custom_call.1} parent=1 // pred_region
      _
    $region29: #{tpu_custom_call.1} parent=1 // pred_fallthru
      _
    // Predicated region
    $region30: #{tpu_custom_call.1} parent=1 // pred_check
      _
    $region31: #{tpu_custom_call.1} parent=1 // pred_check_branch
      %61 = sbr.rel (0) target = $region33
    $region32: #{tpu_custom_call.1} parent=1 // pred_region
      %63 = dma.done [#allocation4], 128
    $region33: #{tpu_custom_call.1} parent=1 // pred_fallthru
      _
    // Predicated region
    $region34: #{tpu_custom_call.1} parent=1 // pred_check
      _
    $region35: #{tpu_custom_call.1} parent=1 // pred_check_branch
      %65 = sbr.rel (0) target = $region37
    $region36: #{tpu_custom_call.1} parent=1 // pred_region
      %67 = dma.done [#allocation6], 256
    $region37: #{tpu_custom_call.1} parent=1 // pred_fallthru
      _
    // Predicated region
    $region38: #{tpu_custom_call.1} parent=1 // pred_check
      _
    $region39: #{tpu_custom_call.1} parent=1 // pred_check_branch
      %69 = sbr.rel (0) target = $region41
    $region40: #{tpu_custom_call.1} parent=1 // pred_region
      %71 = dma.done [#allocation6], 2048
    $region41: #{tpu_custom_call.1} parent=1 // pred_fallthru
      _
    %v72 = vld [vmem:[#allocation5] sm:$0xff]
    %v73 = vld [vmem:[#allocation5 + $0x8] sm:$0xff]
    %v74 = vld [vmem:[#allocation3] sm:$0xff]
    %v75 = vld [vmem:[%s2] sm:$0x1]
    %v77 = vperm.slane %v75, 0
    %vm79 = vcmask 130048
    %v81 = vsel %vm79, %v74, 0
    %83 = vmatpush.msra.mxu0 0.0
    %84 = vmatpush.msra.mxu0 0.0
    %85 = vmatpush.msra.mxu0 0.0
    %86 = vmatpush.msra.mxu0 0.0
    %87 = vmatpush.msra.mxu0 0.0
    %88 = vmatpush.msra.mxu0 0.0
    %89 = vmatpush.msra.mxu0 0.0
    %90 = vmatpush.msra.mxu0 0.0
    %91 = vmatpush.msra.mxu0 0.0
    %92 = vmatpush.msra.mxu0 0.0
    %93 = vmatpush.msra.mxu0 0.0
    %94 = vmatpush.msra.mxu0 0.0
    %95 = vmatpush.msra.mxu0 0.0
    %96 = vmatpush.msra.mxu0 0.0
    %97 = vmatpush.msra.mxu0 %v73
    %98 = vmatpush.msra.mxu0 %v72
    %99 = vmatmul.f32.gmra.mxu0 %v81
    %v100 = vpop.f32.mrf.mxu0
    %v101 = vadd.f32 %v77, %v100
    %102 = vdwg.mxu0
    %v103 = vmax.f32 %v101, 0.0
    %v104 = vld [vmem:[#allocation7] sm:$0xff]
    %v105 = vld [vmem:[#allocation7 + $0x8] sm:$0xff]
    %v106 = vld [vmem:[#allocation7 + $0x10] sm:$0xff]
    %v107 = vld [vmem:[#allocation7 + $0x18] sm:$0xff]
    %v108 = vld [vmem:[#allocation7 + $0x20] sm:$0xff]
    %v109 = vld [vmem:[#allocation7 + $0x28] sm:$0xff]
    %v110 = vld [vmem:[#allocation7 + $0x30] sm:$0xff]
    %v111 = vld [vmem:[#allocation7 + $0x38] sm:$0xff]
    %v112 = vld [vmem:[#allocation7 + $0x40] sm:$0xff]
    %v113 = vld [vmem:[#allocation7 + $0x48] sm:$0xff]
    %v114 = vld [vmem:[#allocation7 + $0x50] sm:$0xff]
    %v115 = vld [vmem:[#allocation7 + $0x58] sm:$0xff]
    %v116 = vld [vmem:[#allocation7 + $0x60] sm:$0xff]
    %v117 = vld [vmem:[#allocation7 + $0x68] sm:$0xff]
    %v118 = vld [vmem:[#allocation7 + $0x70] sm:$0xff]
    %v119 = vld [vmem:[#allocation7 + $0x78] sm:$0xff]
    %v120 = vld [vmem:[%s4] sm:$0x1]
    %v122 = vperm.slane %v120, 0
    %124 = vmatpush.msra.mxu0 %v119
    %125 = vmatpush.msra.mxu0 %v118
    %126 = vmatpush.msra.mxu0 %v117
    %127 = vmatpush.msra.mxu0 %v116
    %128 = vmatpush.msra.mxu0 %v115
    %129 = vmatpush.msra.mxu0 %v114
    %130 = vmatpush.msra.mxu0 %v113
    %131 = vmatpush.msra.mxu0 %v112
    %132 = vmatpush.msra.mxu0 %v111
    %133 = vmatpush.msra.mxu0 %v110
    %134 = vmatpush.msra.mxu0 %v109
    %135 = vmatpush.msra.mxu0 %v108
    %136 = vmatpush.msra.mxu0 %v107
    %137 = vmatpush.msra.mxu0 %v106
    %138 = vmatpush.msra.mxu0 %v105
    %139 = vmatpush.msra.mxu0 %v104
    %140 = vmatmul.f32.gmra.mxu0 %v103
    %v141 = vpop.f32.mrf.mxu0
    %v142 = vadd.f32 %v122, %v141
    %143 = vdwg.mxu0
    %v144 = vmax.f32 %v142, 0.0
    %v145 = vld [vmem:[%s5] sm:$0x1]
    %v147 = vperm.slane %v145, 0
    %v149 = vmul.f32 %v144, %v147
    %150 = vadd.xlane.f32.xlu0 %v149
    %v151 = vpop.xlane.xlu0 %150
    %s152 = sld [smem:[#allocation2]]
    %v153 = vstv %s152
    %v154 = vadd.f32 %v151, %v153
    %vm155 = vcmask 7168
    %156 = vst.msk [vmem:[%s7] sm:$0xff] %vm155, %v154
    // Predicated region
    $region42: #{tpu_custom_call.1} parent=1 // pred_check
      _
    $region43: #{tpu_custom_call.1} parent=1 // pred_check_branch
      %158 = sbr.rel (0) target = $region45
    $region44: #{tpu_custom_call.1} parent=1 // pred_region
      _
    $region45: #{tpu_custom_call.1} parent=1 // pred_fallthru
      _
    // Predicated region
    $region46: #{tpu_custom_call.1} parent=1 // pred_check
      _
    $region47: #{tpu_custom_call.1} parent=1 // pred_check_branch
      %160 = sbr.rel (0) target = $region49
    $region48: #{tpu_custom_call.1} parent=1 // pred_region
      _
    $region49: #{tpu_custom_call.1} parent=1 // pred_fallthru
      _
    %161 = vsyncpa [#allocation4], 1
    %162 = vsyncpa [#allocation6], 1

</llo_original>
